<compile_context>
chip_gen: v5e
topology: v5e:2x2
jax: 0.10.0
libtpu: 0.0.40
codegen_flags: <defaults>
</compile_context>

<pallas_src>
import jax
import jax.numpy as jnp
from jax.experimental import pallas as pl
from jax.experimental.pallas import tpu as pltpu


def _round_up(a, m):
    return ((a + m - 1) // m) * m


def _choose_tile_n(n, d):
    # Bytes-based tile sizing: ~4 MiB of f32 node features per tile
    # (double-buffered by the pipeline), capped at 2048 nodes, multiple of 128
    # so the lane-dense ids block (1, tile_n) stays legal when multi-tile.
    target_bytes = 4 << 20
    t = target_bytes // (4 * d)
    t = max(128, min(2048, (t // 128) * 128))
    if t >= n:
        return _round_up(n, 8)
    return t


def readout_kernel(x_ref, w_ref, b_ref, idr_ref, idc_ref, glo_ref, ghi_ref,
                   out1_ref, out2_ref):
    """One grid step = one node tile; accumulates into resident [B, D] outputs."""
    t = pl.program_id(0)
    num_graphs = out1_ref.shape[0]
    neg_inf = jnp.float32(-jnp.inf)

    @pl.when(t == 0)
    def _init():
        out1_ref[...] = jnp.zeros_like(out1_ref)
        out2_ref[...] = jnp.full_like(out2_ref, neg_inf)

    x = x_ref[...]                                   # [tile_n, D] f32
    w = w_ref[...]                                   # [1, D] f32 (lane-dense)
    b = b_ref[0, 0]                                  # scalar bias (SMEM)

    # Linear(D, 1) + sigmoid, once per node: VPU multiply + XLU lane-reduce.
    logits = jnp.sum(x * w, axis=-1, keepdims=True) + b      # [tile_n, 1]
    score = jax.nn.sigmoid(logits)
    sx = score * x                                           # [tile_n, D]

    # --- segment-sum pool: one MXU matmul with a lane-dense one-hot ---------
    ids_row = idr_ref[...]                           # [1, tile_n] int32
    gid = jax.lax.broadcasted_iota(jnp.int32, (num_graphs, ids_row.shape[1]), 0)
    onehot = (gid == ids_row).astype(jnp.float32)    # [B, tile_n]
    out1_ref[...] += jnp.dot(onehot, sx, preferred_element_type=jnp.float32)

    # --- segment-max pool: loop only over graphs present in this tile -------
    ids_col = idc_ref[...]                           # [tile_n, 1] int32
    g_lo = glo_ref[t]
    g_hi = ghi_ref[t]

    def gmax_body(g, carry):
        xg = jnp.where(ids_col == g, x, neg_inf)             # [tile_n, D]
        row_max = jnp.max(xg, axis=0, keepdims=True)         # [1, D]
        cur = out2_ref[pl.ds(g, 1), :]                       # [1, D]
        out2_ref[pl.ds(g, 1), :] = jnp.maximum(cur, row_max)
        return carry

    jax.lax.fori_loop(g_lo, g_hi + 1, gmax_body, 0)


def readout_phase(x, w, b, batch, num_graphs, *, tile_n=None):
    """x: [N, D] f32, w: [1, D], b: [1, 1], batch: [N] int32 ids in [0, num_graphs)."""
    x = jnp.asarray(x, jnp.float32)
    n, d = x.shape
    w_row = jnp.asarray(w, jnp.float32).reshape(1, d)
    b = jnp.asarray(b, jnp.float32).reshape(1, 1)
    batch = jnp.asarray(batch, jnp.int32).reshape(-1)

    if tile_n is None:
        tile_n = _choose_tile_n(n, d)
    else:
        tile_n = _round_up(max(int(tile_n), 8), 8)
        if tile_n < n:
            tile_n = _round_up(tile_n, 128)   # lane-dense ids block needs %128
    if tile_n >= n:
        tile_n = _round_up(n, 8)              # single tile
    n_pad = _round_up(n, tile_n)

    if n_pad != n:
        x = jnp.pad(x, ((0, n_pad - n), (0, 0)))
        # Out-of-range graph id -> padded rows contribute to neither pool.
        batch = jnp.pad(batch, (0, n_pad - n), constant_values=num_graphs)

    n_tiles = n_pad // tile_n
    ids_row = batch.reshape(1, n_pad)     # lane-dense layout (one-hot build)
    ids_col = batch.reshape(n_pad, 1)     # sublane layout (max masking)

    # Per-tile [lo, hi] graph-id range over VALID rows only (every tile has at
    # least one valid row).  Correct for any id ordering; tight (1-3 graphs per
    # tile) when `batch` is sorted as in torch_geometric.
    tiles = batch.reshape(n_tiles, tile_n)
    valid = tiles < num_graphs
    g_lo = jnp.min(jnp.where(valid, tiles, num_graphs - 1), axis=1).astype(jnp.int32)
    g_hi = jnp.max(jnp.where(valid, tiles, 0), axis=1).astype(jnp.int32)

    out1, out2 = pl.pallas_call(
        readout_kernel,
        out_shape=(jax.ShapeDtypeStruct((num_graphs, d), jnp.float32),
                   jax.ShapeDtypeStruct((num_graphs, d), jnp.float32)),
        grid=(n_tiles,),
        in_specs=[
            pl.BlockSpec((tile_n, d), lambda t: (t, 0)),        # x node tile
            pl.BlockSpec((1, d), lambda t: (0, 0)),             # w row (resident)
            pl.BlockSpec(memory_space=pltpu.MemorySpace.SMEM),  # bias scalar
            pl.BlockSpec((1, tile_n), lambda t: (0, t)),        # ids, lane-dense
            pl.BlockSpec((tile_n, 1), lambda t: (t, 0)),        # ids, sublane
            pl.BlockSpec(memory_space=pltpu.MemorySpace.SMEM),  # per-tile g_lo
            pl.BlockSpec(memory_space=pltpu.MemorySpace.SMEM),  # per-tile g_hi
        ],
        # Constant block index -> outputs stay resident in VMEM across the
        # node-tile grid (accumulators); single HBM writeback at the end.
        out_specs=(
            pl.BlockSpec((num_graphs, d), lambda t: (0, 0)),
            pl.BlockSpec((num_graphs, d), lambda t: (0, 0)),
        ),
        compiler_params=pltpu.CompilerParams(
            dimension_semantics=("arbitrary",)),
    )(x, w_row, b, ids_row, ids_col, g_lo, g_hi)

    return jnp.concatenate([out1, out2], axis=1)


def reference(x, w, b, batch, num_graphs):
    logits = x @ jnp.asarray(w, jnp.float32).reshape(-1, 1) + b[0, 0]
    score = jax.nn.sigmoid(logits)
    sx = score * x
    out1 = jax.ops.segment_sum(sx, batch, num_segments=num_graphs)
    out2 = jax.ops.segment_max(x, batch, num_segments=num_graphs)
    return jnp.concatenate([out1, out2], axis=1)


if __name__ == "__main__":
    key = jax.random.PRNGKey(0)

    # ---- Test 1: small single-tile case (N=16 nodes, dim=32, 3 graphs) -----
    N, D, B = 16, 32, 3
    kx, kw = jax.random.split(key)
    x = jax.random.normal(kx, (N, D), dtype=jnp.float32)

    # nn.init.xavier_uniform_(Linear(D, 1).weight): U(-a, a), a = sqrt(6/(D+1))
    bound = (6.0 / (D + 1)) ** 0.5
    w = jax.random.uniform(kw, (1, D), dtype=jnp.float32,
                           minval=-bound, maxval=bound)
    b = jnp.zeros((1, 1), dtype=jnp.float32)  # nn.init.constant_(bias, 0)

    batch = jnp.array([0] * 5 + [1] * 6 + [2] * 5, dtype=jnp.int32)

    out = jax.block_until_ready(readout_phase(x, w, b, batch, B))
    ref = reference(x, w, b, batch, B)
    assert out.shape == (B, 2 * D)
    assert jnp.allclose(out, ref, atol=1e-4, rtol=1e-4), "mismatch (test 1)"

    # ---- Test 2: multi-tile grid, interleaved (unsorted) batch ids ---------
    N2, B2 = 300, 5
    x2 = jax.random.normal(jax.random.PRNGKey(1), (N2, D), dtype=jnp.float32)
    batch2 = ((jnp.arange(N2, dtype=jnp.int32) * 7) % B2).astype(jnp.int32)
    out2 = jax.block_until_ready(readout_phase(x2, w, b, batch2, B2, tile_n=128))
    ref2 = reference(x2, w, b, batch2, B2)
    assert out2.shape == (B2, 2 * D)
    assert jnp.allclose(out2, ref2, atol=1e-4, rtol=1e-4), "mismatch (test 2)"

    print("KERNEL_OK")
</pallas_src>

<mosaic_0001>
module attributes {stable_mosaic.version = 11 : i64} {
  func.func @readout_kernel(%arg0: i32, %arg1: memref<16x32xf32, #tpu.memory_space<vmem>>, %arg2: memref<1x32xf32, #tpu.memory_space<vmem>>, %arg3: memref<1x1xf32, #tpu.memory_space<smem>>, %arg4: memref<1x16xi32, #tpu.memory_space<vmem>>, %arg5: memref<16x1xi32, #tpu.memory_space<vmem>>, %arg6: memref<1xi32, #tpu.memory_space<smem>>, %arg7: memref<1xi32, #tpu.memory_space<smem>>, %arg8: memref<3x32xf32, #tpu.memory_space<vmem>>, %arg9: memref<3x32xf32, #tpu.memory_space<vmem>>) attributes {dimension_semantics = [#tpu.dimension_semantics<arbitrary>], iteration_bounds = array<i64: 1>, scalar_prefetch = 0 : i64, scratch_operands = 0 : i64, tpu.core_type = #tpu.core_type<tc>, window_params = [{transform_indices = @transform_0, window_bounds = array<i64: 16, 32>}, {pipeline_mode = #tpu.pipeline_mode<synchronous>, transform_indices = @transform_1, window_bounds = array<i64: 1, 32>}, {transform_indices = @transform_2, window_bounds = array<i64: 1, 1>}, {transform_indices = @transform_3, window_bounds = array<i64: 1, 16>}, {transform_indices = @transform_4, window_bounds = array<i64: 16, 1>}, {transform_indices = @transform_5, window_bounds = array<i64: 1>}, {transform_indices = @transform_6, window_bounds = array<i64: 1>}, {pipeline_mode = #tpu.pipeline_mode<synchronous>, transform_indices = @transform_7, window_bounds = array<i64: 3, 32>}, {pipeline_mode = #tpu.pipeline_mode<synchronous>, transform_indices = @transform_8, window_bounds = array<i64: 3, 32>}]} {
    %c0_i32 = arith.constant 0 : i32
    %0 = arith.cmpi eq, %arg0, %c0_i32 : i32
    %1 = arith.extui %0 : i1 to i32
    %cst = arith.constant 0xFF800000 : f32
    %c0_i32_0 = arith.constant 0 : i32
    %2 = arith.cmpi ne, %1, %c0_i32_0 : i32
    scf.if %2 {
      %cst_20 = arith.constant 0.000000e+00 : f32
      %37 = vector.broadcast %cst_20 : f32 to vector<3x32xf32>
      %c0_21 = arith.constant 0 : index
      %c0_22 = arith.constant 0 : index
      %38 = vector.load %arg8[%c0_21, %c0_22] : memref<3x32xf32, #tpu.memory_space<vmem>>, vector<3x32xf32>
      tpu.vector_store %arg8[%c0_21, %c0_22], %37 {strides = array<i32>} : memref<3x32xf32, #tpu.memory_space<vmem>>, vector<3x32xf32>,
      %39 = vector.broadcast %cst : f32 to vector<3x32xf32>
      %c0_23 = arith.constant 0 : index
      %c0_24 = arith.constant 0 : index
      %40 = vector.load %arg9[%c0_23, %c0_24] : memref<3x32xf32, #tpu.memory_space<vmem>>, vector<3x32xf32>
      tpu.vector_store %arg9[%c0_23, %c0_24], %39 {strides = array<i32>} : memref<3x32xf32, #tpu.memory_space<vmem>>, vector<3x32xf32>,
    } else {
    }
    %c0 = arith.constant 0 : index
    %c0_1 = arith.constant 0 : index
    %3 = vector.load %arg1[%c0, %c0_1] : memref<16x32xf32, #tpu.memory_space<vmem>>, vector<16x32xf32>
    %c0_2 = arith.constant 0 : index
    %c0_3 = arith.constant 0 : index
    %4 = vector.load %arg2[%c0_2, %c0_3] : memref<1x32xf32, #tpu.memory_space<vmem>>, vector<1x32xf32>
    %c0_4 = arith.constant 0 : index
    %c0_5 = arith.constant 0 : index
    %5 = memref.load %arg3[%c0_4, %c0_5] : memref<1x1xf32, #tpu.memory_space<smem>>
    %6 = vector.broadcast %4 : vector<1x32xf32> to vector<16x32xf32>
    %7 = arith.mulf %3, %6 : vector<16x32xf32>
    %cst_6 = arith.constant dense<0.000000e+00> : vector<16xf32>
    %8 = vector.multi_reduction <add>, %7, %cst_6 [1] : vector<16x32xf32> to vector<16xf32>
    %9 = vector.shape_cast %8 : vector<16xf32> to vector<16x1xf32>
    %10 = vector.broadcast %5 : f32 to vector<16x1xf32>
    %11 = arith.addf %9, %10 : vector<16x1xf32>
    %12 = arith.negf %11 : vector<16x1xf32>
    %13 = math.exp %12 : vector<16x1xf32>
    %cst_7 = arith.constant 1.000000e+00 : f32
    %14 = vector.broadcast %cst_7 : f32 to vector<16x1xf32>
    %15 = arith.addf %14, %13 : vector<16x1xf32>
    %16 = arith.divf %14, %15 : vector<16x1xf32>
    %17 = vector.broadcast %16 : vector<16x1xf32> to vector<16x32xf32>
    %18 = arith.mulf %17, %3 : vector<16x32xf32>
    %c0_8 = arith.constant 0 : index
    %c0_9 = arith.constant 0 : index
    %19 = vector.load %arg4[%c0_8, %c0_9] : memref<1x16xi32, #tpu.memory_space<vmem>>, vector<1x16xi32>
    %20 = tpu.iota {dimensions = array<i32: 0>} : vector<3x16xi32>
    %21 = vector.broadcast %19 : vector<1x16xi32> to vector<3x16xi32>
    %22 = arith.cmpi eq, %20, %21 : vector<3x16xi32>
    %23 = arith.extui %22 : vector<3x16xi1> to vector<3x16xi32>
    %24 = arith.sitofp %23 : vector<3x16xi32> to vector<3x16xf32>
    %c0_10 = arith.constant 0 : index
    %c0_11 = arith.constant 0 : index
    %25 = vector.load %arg8[%c0_10, %c0_11] : memref<3x32xf32, #tpu.memory_space<vmem>>, vector<3x32xf32>
    %cst_12 = arith.constant dense<0.000000e+00> : vector<3x32xf32>
    %26 = tpu.matmul %24, %18, %cst_12 {dimension_numbers = #tpu.dot_dimension_numbers<[1], [0], [0], [1], [0, 0, 1, 1], [], []>} : vector<3x16xf32>, vector<16x32xf32>, vector<3x32xf32> -> vector<3x32xf32>
    %27 = arith.addf %25, %26 : vector<3x32xf32>
    %c0_13 = arith.constant 0 : index
    %c0_14 = arith.constant 0 : index
    %28 = vector.load %arg8[%c0_13, %c0_14] : memref<3x32xf32, #tpu.memory_space<vmem>>, vector<3x32xf32>
    tpu.vector_store %arg8[%c0_13, %c0_14], %27 {strides = array<i32>} : memref<3x32xf32, #tpu.memory_space<vmem>>, vector<3x32xf32>,
    %c0_15 = arith.constant 0 : index
    %c0_16 = arith.constant 0 : index
    %29 = vector.load %arg5[%c0_15, %c0_16] : memref<16x1xi32, #tpu.memory_space<vmem>>, vector<16x1xi32>
    %30 = arith.index_cast %arg0 : i32 to index
    %31 = memref.load %arg6[%30] : memref<1xi32, #tpu.memory_space<smem>>
    %32 = arith.index_cast %arg0 : i32 to index
    %33 = memref.load %arg7[%32] : memref<1xi32, #tpu.memory_space<smem>>
    %c1_i32 = arith.constant 1 : i32
    %34 = arith.addi %33, %c1_i32 : i32
    %c0_i32_17 = arith.constant 0 : i32
    %cst_18 = arith.constant 0xFF800000 : f32
    %35 = arith.subi %34, %31 : i32
    %36 = arith.addi %31, %35 : i32
    %c1_i32_19 = arith.constant 1 : i32
    scf.for %arg10 = %31 to %36 step %c1_i32_19  : i32 {
      %37 = vector.broadcast %arg10 : i32 to vector<16x1xi32>
      %38 = arith.cmpi eq, %29, %37 : vector<16x1xi32>
      %39 = vector.shape_cast %38 : vector<16x1xi1> to vector<16x1xi1>
      %40 = vector.broadcast %39 : vector<16x1xi1> to vector<16x32xi1>
      %41 = vector.broadcast %cst_18 : f32 to vector<16x32xf32>
      %42 = arith.select %40, %3, %41 : vector<16x32xi1>, vector<16x32xf32>
      %cst_20 = arith.constant dense<0xFF800000> : vector<32xf32>
      %43 = vector.multi_reduction <maximumf>, %42, %cst_20 [0] : vector<16x32xf32> to vector<32xf32>
      %44 = vector.shape_cast %43 : vector<32xf32> to vector<1x32xf32>
      %45 = arith.index_cast %arg10 : i32 to index
      %c0_21 = arith.constant 0 : index
      %46 = vector.load %arg9[%45, %c0_21] : memref<3x32xf32, #tpu.memory_space<vmem>>, vector<1x32xf32>
      %47 = arith.maximumf %46, %44 : vector<1x32xf32>
      %48 = arith.index_cast %arg10 : i32 to index
      %c0_22 = arith.constant 0 : index
      %49 = vector.load %arg9[%48, %c0_22] : memref<3x32xf32, #tpu.memory_space<vmem>>, vector<1x32xf32>
      tpu.vector_store %arg9[%48, %c0_22], %47 {strides = array<i32>} : memref<3x32xf32, #tpu.memory_space<vmem>>, vector<1x32xf32>,
    }
    return
  }
  func.func @transform_0(%arg0: i32) -> (i32, i32) {
    %c0_i32 = arith.constant 0 : i32
    %c0_i32_0 = arith.constant 0 : i32
    return %arg0, %c0_i32 : i32, i32
  }
  func.func @transform_1(%arg0: i32) -> (i32, i32) {
    %c0_i32 = arith.constant 0 : i32
    %c0_i32_0 = arith.constant 0 : i32
    %c0_i32_1 = arith.constant 0 : i32
    return %c0_i32, %c0_i32_0 : i32, i32
  }
  func.func @transform_2(%arg0: i32) -> (i32, i32) {
    %c0_i32 = arith.constant 0 : i32
    %c0_i32_0 = arith.constant 0 : i32
    %c0_i32_1 = arith.constant 0 : i32
    return %c0_i32, %c0_i32_0 : i32, i32
  }
  func.func @transform_3(%arg0: i32) -> (i32, i32) {
    %c0_i32 = arith.constant 0 : i32
    %c0_i32_0 = arith.constant 0 : i32
    return %c0_i32, %arg0 : i32, i32
  }
  func.func @transform_4(%arg0: i32) -> (i32, i32) {
    %c0_i32 = arith.constant 0 : i32
    %c0_i32_0 = arith.constant 0 : i32
    return %arg0, %c0_i32 : i32, i32
  }
  func.func @transform_5(%arg0: i32) -> i32 {
    %c0_i32 = arith.constant 0 : i32
    %c0_i32_0 = arith.constant 0 : i32
    return %c0_i32 : i32
  }
  func.func @transform_6(%arg0: i32) -> i32 {
    %c0_i32 = arith.constant 0 : i32
    %c0_i32_0 = arith.constant 0 : i32
    return %c0_i32 : i32
  }
  func.func @transform_7(%arg0: i32) -> (i32, i32) {
    %c0_i32 = arith.constant 0 : i32
    %c0_i32_0 = arith.constant 0 : i32
    %c0_i32_1 = arith.constant 0 : i32
    return %c0_i32, %c0_i32_0 : i32, i32
  }
  func.func @transform_8(%arg0: i32) -> (i32, i32) {
    %c0_i32 = arith.constant 0 : i32
    %c0_i32_0 = arith.constant 0 : i32
    %c0_i32_1 = arith.constant 0 : i32
    return %c0_i32, %c0_i32_0 : i32, i32
  }
}

</mosaic_0001>

<llo_original>
// kernel: tpu_custom_call.1
$region0: #{tpu_custom_call.1}
  #allocation0 [shape = 'u32[]', space=smem, size = 0x4, offset = 0x4, fixed_abs, tag = 'smem constant byte address 0x4 - core index']
  #allocation1 [shape = 'u32[72,128]{1,0:T(1,128)}', space=vmem, size = 0x9000, scoped, tag = 'internal scratch']
  #allocation2 [shape = 'f32[1,1]{1,0:T(1,128)S(6)}', space=smem, size = 0x200, scoped, tag = 'scoped memory for tpu_custom_call.1']
  #allocation3 [shape = 's32[1]{0:T(128)S(6)}', space=smem, size = 0x200, scoped, tag = 'scoped memory for tpu_custom_call.1']
  #allocation4 [shape = 's32[1]{0:T(128)S(6)}', space=smem, size = 0x200, scoped, tag = 'scoped memory for tpu_custom_call.1']
  %s0 = inlined_call_operand.vmem [shape: f32[16,32], index: 0, kind: input, shape index: {}]
  %s1 = inlined_call_operand.vmem [shape: f32[1,32], index: 1, kind: input, shape index: {}]
  %s2 = inlined_call_operand.<no memory space> [shape: f32[1,1], index: 2, kind: input, shape index: {}]
  %s3 = inlined_call_operand.vmem [shape: s32[1,16], index: 3, kind: input, shape index: {}]
  %s4 = inlined_call_operand.vmem [shape: s32[16,1], index: 4, kind: input, shape index: {}]
  %s5 = inlined_call_operand.<no memory space> [shape: s32[1], index: 5, kind: input, shape index: {}]
  %s6 = inlined_call_operand.<no memory space> [shape: s32[1], index: 6, kind: input, shape index: {}]
  %s7 = inlined_call_operand.hbm [shape: f32[3,32], index: 7, kind: output, shape index: {0}]
  %s8 = inlined_call_operand.hbm [shape: f32[3,32], index: 8, kind: output, shape index: {1}]
  %9 = xla_tuple %s7, %s8
  %s10 = sld [smem:[#allocation0]]
  $region57: #{tpu_custom_call.1} parent=0
    _
  %s12 = ssub.s32 1, %s10
  %s13 = scalar_select 0, %s12, %s10
  %14 = sst [smem:[#allocation2]] %s2
  %15 = sst [smem:[#allocation3]] %s5
  %16 = sst [smem:[#allocation4]] %s6
  $region1: #{tpu_custom_call.1} parent=0
    #allocation5 [shape = 'u8[2048]{0}', space=vmem, size = 0x800, scoped, tag = 'output window, operand 0, single buffered']
    #allocation6 [shape = 's32[1]{0}', space=sflag, size = 0x4, scoped, tag = 'scoped memory for tpu_custom_call.1']
    #allocation7 [shape = 'u8[2048]{0}', space=vmem, size = 0x800, scoped, tag = 'output window, operand 1, single buffered']
    #allocation8 [shape = 's32[1]{0}', space=sflag, size = 0x4, scoped, tag = 'scoped memory for tpu_custom_call.1']
    %17 = vsyncpa [#allocation6], 0
    %18 = vsyncpa [#allocation8], 0
    // Predicated region
    $region2: #{tpu_custom_call.1} parent=1 // pred_check
      _
    $region3: #{tpu_custom_call.1} parent=1 // pred_check_branch
      %20 = sbr.rel (0) target = $region5
    $region4: #{tpu_custom_call.1} parent=1 // pred_region
      _
    $region5: #{tpu_custom_call.1} parent=1 // pred_fallthru
      _
    // Predicated region
    $region6: #{tpu_custom_call.1} parent=1 // pred_check
      _
    $region7: #{tpu_custom_call.1} parent=1 // pred_check_branch
      %22 = sbr.rel (0) target = $region9
    $region8: #{tpu_custom_call.1} parent=1 // pred_region
      _
    $region9: #{tpu_custom_call.1} parent=1 // pred_fallthru
      _
    // Predicated region
    $region10: #{tpu_custom_call.1} parent=1 // pred_check
      _
    $region11: #{tpu_custom_call.1} parent=1 // pred_check_branch
      %24 = sbr.rel (0) target = $region13
    $region12: #{tpu_custom_call.1} parent=1 // pred_region
      _
    $region13: #{tpu_custom_call.1} parent=1 // pred_fallthru
      _
    // Predicated region
    $region14: #{tpu_custom_call.1} parent=1 // pred_check
      _
    $region15: #{tpu_custom_call.1} parent=1 // pred_check_branch
      %26 = sbr.rel (0) target = $region17
    $region16: #{tpu_custom_call.1} parent=1 // pred_region
      _
    $region17: #{tpu_custom_call.1} parent=1 // pred_fallthru
      _
    // Predicated region
    $region18: #{tpu_custom_call.1} parent=1 // pred_check
      _
    $region19: #{tpu_custom_call.1} parent=1 // pred_check_branch
      %28 = sbr.rel (0) target = $region21
    $region20: #{tpu_custom_call.1} parent=1 // pred_region
      _
    $region21: #{tpu_custom_call.1} parent=1 // pred_fallthru
      _
    // Predicated region
    $region22: #{tpu_custom_call.1} parent=1 // pred_check
      _
    $region23: #{tpu_custom_call.1} parent=1 // pred_check_branch
      %30 = sbr.rel (0) target = $region25
    $region24: #{tpu_custom_call.1} parent=1 // pred_region
      _
    $region25: #{tpu_custom_call.1} parent=1 // pred_fallthru
      _
    // Predicated region
    $region26: #{tpu_custom_call.1} parent=1 // pred_check
      _
    $region27: #{tpu_custom_call.1} parent=1 // pred_check_branch
      %32 = sbr.rel (0) target = $region29
    $region28: #{tpu_custom_call.1} parent=1 // pred_region
      _
    $region29: #{tpu_custom_call.1} parent=1 // pred_fallthru
      _
    %p33 = scmp.eq.s32.totalorder 0, 0
    // Predicated region
    $region30: #{tpu_custom_call.1} parent=1 // pred_check
      %p34 = pneg %p33
    $region31: #{tpu_custom_call.1} parent=1 // pred_check_branch
      %36 = sbr.rel (%p34) target = $region33
    $region32: #{tpu_custom_call.1} parent=1 // pred_region
      %vm37 = vcmask 256000
      %38 = vst.msk [vmem:[#allocation5] sm:$0x7] %vm37, 0.0
      %39 = vst.msk [vmem:[#allocation7] sm:$0x7] %vm37, -inf
    $region33: #{tpu_custom_call.1} parent=1 // pred_fallthru
      _
    %v40 = vld [vmem:[%s0] sm:$0xff]
    %v41 = vld [vmem:[%s0 + $0x8] sm:$0xff]
    %v42 = vld [vmem:[%s1] sm:$0x1]
    %s43 = sld [smem:[#allocation2]]
    %v45 = vperm.slane %v42, 0
    %v47 = vmul.f32 %v40, %v45
    %v48 = vmul.f32 %v41, %v45
    %vm49 = vcmask 261120
    %v50 = vsel %vm49, %v47, 0.0
    %51 = vadd.xlane.f32.xlu0 %v50
    %v52 = vpop.xlane.xlu0 %51
    %v53 = vsel %vm49, %v48, 0.0
    %54 = vadd.xlane.f32.xlu0 %v53
    %v55 = vpop.xlane.xlu0 %54
    %v56 = vstv %s43
    %v57 = vadd.f32 %v52, %v56
    %v58 = vadd.f32 %v55, %v56
    %v59 = vxor.u32 %v57, 2147483648
    %v60 = vxor.u32 %v58, 2147483648
    %v61 = vmul.f32 %v59, 1.442695
    %v62 = vpow.pop %v61
    %v63 = vmul.f32 %v60, 1.442695
    %v64 = vpow.pop %v63
    %v65 = vadd.f32 %v62, 1.0
    %v66 = vadd.f32 %v64, 1.0
    %v67 = vrcp.pop %v65
    %v68 = vmul.f32 %v65, %v67
    %v69 = vsub.f32 1.0, %v68
    %v70 = vmul.f32 %v67, %v69
    %v71 = vadd.f32 %v67, %v70
    %vm72 = vweird.f32 %v65
    %vm73 = vweird.f32 %v67
    %vm74 = vmor %vm72, %vm73
    %v75 = vsel %vm74, %v67, %v71
    %v76 = vand.u32 2147483647, %v65
    %vm77 = vcmp.eq.f32.partialorder %v76, 8.507059e+37
    %v78 = vand.u32 %v65, 2147483648
    %v79 = vor.u32 1.1754944e-38, %v78
    %v80 = vsel %vm77, %v79, %v75
    %v81 = vmul.f32 1.0, %v80
    %v82 = vrcp.pop %v66
    %v83 = vmul.f32 %v66, %v82
    %v84 = vsub.f32 1.0, %v83
    %v85 = vmul.f32 %v82, %v84
    %v86 = vadd.f32 %v82, %v85
    %vm87 = vweird.f32 %v66
    %vm88 = vweird.f32 %v82
    %vm89 = vmor %vm87, %vm88
    %v90 = vsel %vm89, %v82, %v86
    %v91 = vand.u32 2147483647, %v66
    %vm92 = vcmp.eq.f32.partialorder %v91, 8.507059e+37
    %v93 = vand.u32 %v66, 2147483648
    %v94 = vor.u32 1.1754944e-38, %v93
    %v95 = vsel %vm92, %v94, %v90
    %v96 = vmul.f32 1.0, %v95
    %v97 = vmul.f32 %v81, %v40
    %v98 = vmul.f32 %v96, %v41
    %v99 = vld [vmem:[%s3] sm:$0x1]
    %v100 = vlaneseq
    %v101 = vshrl.u32 %v100, 7
    %v102 = vperm.slane %v99, 0
    %vm103 = vcmp.eq.s32.totalorder %v101, %v102
    %v104 = vsel %vm103, 1, 0
    %v105 = vcvt.s32.f32 %v104
    %v106 = vld [vmem:[#allocation5] sm:$0x7]
    %vm107 = vcmask 130048
    %v109 = vsel %vm107, %v105, 0
    %111 = vmatpush.msra.mxu0 0.0
    %112 = vmatpush.msra.mxu0 0.0
    %113 = vmatpush.msra.mxu0 0.0
    %114 = vmatpush.msra.mxu0 0.0
    %115 = vmatpush.msra.mxu0 0.0
    %116 = vmatpush.msra.mxu0 0.0
    %117 = vmatpush.msra.mxu0 0.0
    %118 = vmatpush.msra.mxu0 0.0
    %119 = vmatpush.msra.mxu0 0.0
    %120 = vmatpush.msra.mxu0 0.0
    %121 = vmatpush.msra.mxu0 0.0
    %122 = vmatpush.msra.mxu0 0.0
    %123 = vmatpush.msra.mxu0 0.0
    %124 = vmatpush.msra.mxu0 0.0
    %125 = vmatpush.msra.mxu0 %v98
    %126 = vmatpush.msra.mxu0 %v97
    %127 = vmatmul.f32.gmra.mxu0 %v109
    %v128 = vpop.f32.mrf.mxu0
    %v129 = vadd.f32 0.0, %v128
    %130 = vdwg.mxu0
    %v131 = vadd.f32 %v106, %v129
    %vm132 = vcmask 256000
    %133 = vst.msk [vmem:[#allocation5] sm:$0x7] %vm132, %v131
    %v134 = vld [vmem:[%s4] sm:$0xff]
    %v135 = vld [vmem:[%s4 + $0x8] sm:$0xff]
    %s136 = sld [smem:[#allocation3]]
    %s137 = sld [smem:[#allocation4]]
    %s138 = sadd.s32 %s137, 1
    // While loop
    $region34: #{tpu_custom_call.1} parent=1 // loop_pre_header
      _
    $region35: #{tpu_custom_call.1} parent=1 // loop_header
      %s140 = sphi %s136, %s142
      %p141 = scmp.ge.s32.totalorder %s140, %s138
    $region36: #{tpu_custom_call.1} parent=1 // loop_header_branch
      %144 = sbr.rel (%p141) target = $region40
    $region37: #{tpu_custom_call.1} parent=1 // loop_body
      %v145 = vstv %s140
      %vm146 = vcmp.eq.s32.totalorder %v134, %v145
      %vm147 = vcmp.eq.s32.totalorder %v135, %v145
      %v148 = vsel %vm146, 1, 0
      %v149 = vsel %vm147, 1, 0
      %150 = vset.pattern.permute.xlu0 0
      %151 = vperm.xlu0 %150, %v148
      %v152 = vpop.permute.xlu0 %151
      %153 = vset.pattern.permute.xlu0 0
      %154 = vperm.xlu0 %153, %v149
      %v155 = vpop.permute.xlu0 %154
      %vm156 = vcmp.eq.s32.totalorder %v152, 1
      %vm157 = vcmp.eq.s32.totalorder %v155, 1
      %v158 = vsel %vm156, %v40, -inf
      %v159 = vsel %vm157, %v41, -inf
      %v160 = vsel %vm49, %v158, -inf
      %v161 = vsel %vm49, %v159, -inf
      %v162 = vmax.f32 %v160, %v161
      %v163 = vrot.slane %v162, 4
      %v164 = vmax.f32 %v162, %v163
      %v165 = vrot.slane %v164, 2
      %v166 = vmax.f32 %v164, %v165
      %v167 = vrot.slane %v166, 1
      %v168 = vmax.f32 %v166, %v167
      %s169 = scalar_lea.vmem [#allocation7], %s140
      %v170 = vld [vmem:[%s169] sm:$0x1]
      %v171 = vmax.f32 %v170, %v168
      %vm172 = vcmask 253952
      %173 = vst.msk [vmem:[%s169] sm:$0x1] %vm172, %v171
    $region38: #{tpu_custom_call.1} parent=1 // loop_footer
      %s142 = sadd.s32 %s140, 1
    $region39: #{tpu_custom_call.1} parent=1 // loop_footer_branch
      %139 = sbr.rel target = $region35
    $region40: #{tpu_custom_call.1} parent=1 // loop_exit
      _
    // Predicated region
    $region41: #{tpu_custom_call.1} parent=1 // pred_check
      _
    $region42: #{tpu_custom_call.1} parent=1 // pred_check_branch
      %175 = sbr.rel (0) target = $region44
    $region43: #{tpu_custom_call.1} parent=1 // pred_region
      %177 = vsyncadd [#allocation6], 0
      %s179 = sshll.u32 [#allocation5], 4
      %s180 = int_to_ptr.vmem [resolvable:$true] %s179
      %s181 = sshll.u32 %s7, 4
      %s182 = int_to_ptr.hbm [resolvable:$true] %s181
      %184 = dma.vmem_to_hbm [thread:$0]  %s180, 64, %s182, [#allocation6]
    $region44: #{tpu_custom_call.1} parent=1 // pred_fallthru
      _
    // Predicated region
    $region45: #{tpu_custom_call.1} parent=1 // pred_check
      _
    $region46: #{tpu_custom_call.1} parent=1 // pred_check_branch
      %186 = sbr.rel (0) target = $region48
    $region47: #{tpu_custom_call.1} parent=1 // pred_region
      %188 = vsyncadd [#allocation8], 0
      %s190 = sshll.u32 [#allocation7], 4
      %s191 = int_to_ptr.vmem [resolvable:$true] %s190
      %s192 = sshll.u32 %s8, 4
      %s193 = int_to_ptr.hbm [resolvable:$true] %s192
      %195 = dma.vmem_to_hbm [thread:$0]  %s191, 64, %s193, [#allocation8]
    $region48: #{tpu_custom_call.1} parent=1 // pred_fallthru
      _
    // Predicated region
    $region49: #{tpu_custom_call.1} parent=1 // pred_check
      _
    $region50: #{tpu_custom_call.1} parent=1 // pred_check_branch
      %197 = sbr.rel (0) target = $region52
    $region51: #{tpu_custom_call.1} parent=1 // pred_region
      %199 = dma.done [#allocation6], 64
    $region52: #{tpu_custom_call.1} parent=1 // pred_fallthru
      _
    // Predicated region
    $region53: #{tpu_custom_call.1} parent=1 // pred_check
      _
    $region54: #{tpu_custom_call.1} parent=1 // pred_check_branch
      %201 = sbr.rel (0) target = $region56
    $region55: #{tpu_custom_call.1} parent=1 // pred_region
      %203 = dma.done [#allocation8], 64
    $region56: #{tpu_custom_call.1} parent=1 // pred_fallthru
      _
    %204 = vsyncpa [#allocation6], 1
    %205 = vsyncpa [#allocation8], 1

</llo_original>
